<compile_context>
chip_gen: v6e
topology: v6e:2x2x1
jax: 0.10.0
libtpu: 0.0.40
codegen_flags: <defaults>
</compile_context>

<pallas_src>
import jax
import jax.numpy as jnp
from jax.experimental import pallas as pl
from jax.experimental.pallas import tpu as pltpu


def _center_kernel(x_ref, m_ref, o_ref):
    # x_ref: (tr, tl) tile of the flattened (N*C, H*W) input.
    # m_ref: (padded_rows, 1) f32 per-row means, resident in VMEM for the
    #        whole grid (constant index_map); slice out this block's rows.
    tr = x_ref.shape[0]
    r0 = pl.multiple_of(pl.program_id(0) * tr, tr)
    m = m_ref[pl.ds(r0, tr), :]                       # (tr, 1) f32
    o_ref[...] = (x_ref[...].astype(jnp.float32) - m).astype(o_ref.dtype)


def _round_up(v: int, m: int) -> int:
    return ((v + m - 1) // m) * m


def _sublane(dtype) -> int:
    # Sublane packing: 8 rows for 4-byte, 16 for 2-byte, 32 for 1-byte dtypes.
    return max(8, 32 // jnp.dtype(dtype).itemsize)


def _block_budget_bytes() -> int:
    # ~4 MiB blocks reach ~85-90% of HBM roofline on v5e/v6e; v7x's ~3.2 TB/s
    # HBM prefers ~8 MiB blocks (still well inside its 64 MiB VMEM when
    # double-buffered in + out).
    try:
        if pltpu.get_tpu_info().vmem_capacity_bytes <= 64 * 1024 * 1024:
            return 8 * 1024 * 1024
    except Exception:
        pass
    return 4 * 1024 * 1024


def input_center(x: jax.Array, means: jax.Array) -> jax.Array:
    """InputCenterLayer.forward: subtract per-channel means from an NCHW batch."""
    n, c, h, w = x.shape
    rows = n * c
    lanes = h * w

    # Lane-dense 2-D view: (N*C, H*W). Row-major collapse of adjacent dims
    # (layout-preserving, free).
    x2 = x.reshape(rows, lanes)

    itemsize = jnp.dtype(x.dtype).itemsize
    sub = _sublane(x.dtype)
    budget = _block_budget_bytes()

    if lanes * itemsize * sub <= budget:
        # Full-lane-width blocks: each block is one contiguous HBM run.
        tl = lanes
        tr = max(sub, (budget // (lanes * itemsize) // sub) * sub)
        tr = min(tr, _round_up(rows, sub))
        # Keep >= 4 row blocks when the input allows it (v7x megacore needs
        # >= 2 steps per TensorCore; also keeps the pipeline busy).
        if rows // tr < 4 and rows >= 4 * sub:
            tr = _round_up(-(-rows // 4), sub)
    else:
        # Very large H*W: minimal sublane-packed row block, split the lane axis
        # into large multiples of 128.
        tr = sub
        tl = max(128, (budget // (tr * itemsize) // 128) * 128)
        tl = min(tl, _round_up(lanes, 128))

    grid = (pl.cdiv(rows, tr), pl.cdiv(lanes, tl))

    # Per-row means column, kept in f32 (subtract happens in f32 in-kernel).
    # Pad to a whole number of row blocks so the in-kernel dynamic slice of
    # the resident column never reads out of bounds.
    means_f32 = jnp.asarray(means, dtype=jnp.float32)
    means_col = jnp.broadcast_to(means_f32.reshape(1, c), (n, c)).reshape(rows, 1)
    padded_rows = grid[0] * tr
    if padded_rows != rows:
        means_col = jnp.pad(means_col, ((0, padded_rows - rows), (0, 0)))

    out2 = pl.pallas_call(
        _center_kernel,
        out_shape=jax.ShapeDtypeStruct((rows, lanes), x.dtype),
        grid=grid,
        in_specs=[
            pl.BlockSpec((tr, tl), lambda i, j: (i, j)),
            # Whole means column, constant block index -> DMA'd once, resident.
            pl.BlockSpec((padded_rows, 1), lambda i, j: (0, 0)),
        ],
        out_specs=pl.BlockSpec((tr, tl), lambda i, j: (i, j)),
        compiler_params=pltpu.CompilerParams(
            # Both grid axes are independent -> megacore sharding on v7x.
            dimension_semantics=("parallel", "parallel"),
            # in + out double-buffered at <= 8 MiB blocks -> <= ~32 MiB; 48 MiB
            # gives headroom and is safe on every generation (v7x has 64 MiB).
            vmem_limit_bytes=48 * 1024 * 1024,
        ),
    )(x2, means_col)

    return out2.reshape(n, c, h, w)


if __name__ == "__main__":
    key = jax.random.PRNGKey(0)

    # Small shapes consistent with the module: batch=2, channels=4, spatial=16.
    N, C, H, W = 2, 4, 16, 16
    x = jax.random.normal(key, (N, C, H, W), dtype=jnp.float32)

    # Deterministic "dataset means" (module __init__ takes a List[float] of length C).
    means = jnp.array([0.485, 0.456, 0.406, 0.5], dtype=jnp.float32)

    out = input_center(x, means)
    out = jax.block_until_ready(out)

    # Reference check (plain JAX broadcast), mirrors the PyTorch repeat/permute.
    ref = x - means.reshape(1, C, 1, 1)
    assert out.shape == x.shape and out.dtype == x.dtype
    assert jnp.allclose(out, ref, atol=1e-6), "mismatch vs reference"

    print("KERNEL_OK")
</pallas_src>

<mosaic_0001>
module attributes {stable_mosaic.version = 11 : i64} {
  func.func @_center_kernel(%arg0: i32, %arg1: i32, %arg2: memref<8x256xf32, #tpu.memory_space<vmem>>, %arg3: memref<8x1xf32, #tpu.memory_space<vmem>>, %arg4: memref<8x256xf32, #tpu.memory_space<vmem>>) attributes {dimension_semantics = [#tpu.dimension_semantics<parallel>, #tpu.dimension_semantics<parallel>], iteration_bounds = array<i64: 1, 1>, scalar_prefetch = 0 : i64, scratch_operands = 0 : i64, tpu.core_type = #tpu.core_type<tc>, window_params = [{transform_indices = @transform_0, window_bounds = array<i64: 8, 256>}, {pipeline_mode = #tpu.pipeline_mode<synchronous>, transform_indices = @transform_1, window_bounds = array<i64: 8, 1>}, {transform_indices = @transform_2, window_bounds = array<i64: 8, 256>}]} {
    %c8_i32 = arith.constant 8 : i32
    %0 = arith.muli %arg0, %c8_i32 : i32
    %1 = tpu.assume_multiple %0, 8 : i32
    %2 = arith.index_cast %1 : i32 to index
    %c0 = arith.constant 0 : index
    %3 = vector.load %arg3[%2, %c0] : memref<8x1xf32, #tpu.memory_space<vmem>>, vector<8x1xf32>
    %c0_0 = arith.constant 0 : index
    %c0_1 = arith.constant 0 : index
    %4 = vector.load %arg2[%c0_0, %c0_1] : memref<8x256xf32, #tpu.memory_space<vmem>>, vector<8x256xf32>
    %5 = vector.broadcast %3 : vector<8x1xf32> to vector<8x256xf32>
    %6 = arith.subf %4, %5 : vector<8x256xf32>
    %c0_2 = arith.constant 0 : index
    %c0_3 = arith.constant 0 : index
    %7 = vector.load %arg4[%c0_2, %c0_3] : memref<8x256xf32, #tpu.memory_space<vmem>>, vector<8x256xf32>
    tpu.vector_store %arg4[%c0_2, %c0_3], %6 {strides = array<i32>} : memref<8x256xf32, #tpu.memory_space<vmem>>, vector<8x256xf32>,
    return
  }
  func.func @transform_0(%arg0: i32, %arg1: i32) -> (i32, i32) {
    %c0_i32 = arith.constant 0 : i32
    return %arg0, %arg1 : i32, i32
  }
  func.func @transform_1(%arg0: i32, %arg1: i32) -> (i32, i32) {
    %c0_i32 = arith.constant 0 : i32
    %c0_i32_0 = arith.constant 0 : i32
    %c0_i32_1 = arith.constant 0 : i32
    return %c0_i32, %c0_i32_0 : i32, i32
  }
  func.func @transform_2(%arg0: i32, %arg1: i32) -> (i32, i32) {
    %c0_i32 = arith.constant 0 : i32
    return %arg0, %arg1 : i32, i32
  }
}

</mosaic_0001>

<llo_original>
// kernel: tpu_custom_call.1
$region0: #{tpu_custom_call.1}
  #allocation0 [shape = 'u32[]', space=smem, size = 0x4, offset = 0x4, fixed_abs, tag = 'smem constant byte address 0x4 - core index']
  #allocation1 [shape = 'u32[144,128]{1,0:T(1,128)}', space=vmem, size = 0x12000, scoped, tag = 'internal scratch']
  %s0 = inlined_call_operand.hbm [shape: f32[8,256], index: 0, kind: input, shape index: {}]
  %s1 = inlined_call_operand.vmem [shape: f32[8,1], index: 1, kind: input, shape index: {}]
  %s2 = inlined_call_operand.hbm [shape: f32[8,256], index: 2, kind: output, shape index: {}]
  %s3 = sld [smem:[#allocation0]]
  $region22: #{tpu_custom_call.1} parent=0
    _
  %s5 = ssub.s32 1, %s3
  %s6 = scalar_select 0, %s5, %s3
  $region1: #{tpu_custom_call.1} parent=0
    #allocation2 [shape = 'u8[8192]{0}', space=vmem, size = 0x2000, scoped, tag = 'input window, operand 0, single buffered']
    #allocation3 [shape = 's32[1]{0}', space=sflag, size = 0x4, scoped, tag = 'scoped memory for tpu_custom_call.1']
    #allocation4 [shape = 's32[1]{0}', space=sflag, size = 0x4, scoped, tag = 'scoped memory for tpu_custom_call.1']
    #allocation5 [shape = 'u8[8192]{0}', space=vmem, size = 0x2000, scoped, tag = 'output window, operand 0, single buffered']
    %7 = vsyncpa [#allocation3], 0
    %8 = vsyncpa [#allocation4], 0
    // Predicated region
    $region2: #{tpu_custom_call.1} parent=1 // pred_check
      _
    $region3: #{tpu_custom_call.1} parent=1 // pred_check_branch
      %10 = sbr.rel (0) target = $region5
    $region4: #{tpu_custom_call.1} parent=1 // pred_region
      %s12 = ssub.s32 256, 256
      %13 = vsyncadd [#allocation3], %s12
      %s15 = sshll.u32 [#allocation2], 4
      %s16 = int_to_ptr.vmem [resolvable:$true] %s15
      %18 = dma.hbm_to_vmem [thread:$0]  %s0, 256, %s16, [#allocation3]
    $region5: #{tpu_custom_call.1} parent=1 // pred_fallthru
      _
    // Predicated region
    $region6: #{tpu_custom_call.1} parent=1 // pred_check
      _
    $region7: #{tpu_custom_call.1} parent=1 // pred_check_branch
      %20 = sbr.rel (0) target = $region9
    $region8: #{tpu_custom_call.1} parent=1 // pred_region
      _
    $region9: #{tpu_custom_call.1} parent=1 // pred_fallthru
      _
    // Predicated region
    $region10: #{tpu_custom_call.1} parent=1 // pred_check
      _
    $region11: #{tpu_custom_call.1} parent=1 // pred_check_branch
      %22 = sbr.rel (0) target = $region13
    $region12: #{tpu_custom_call.1} parent=1 // pred_region
      %23 = dma.done [#allocation3], 256
    $region13: #{tpu_custom_call.1} parent=1 // pred_fallthru
      _
    %s24 = smul.u32 0, 8
    %s25 = scalar_lea.vmem %s1, %s24
    %v26 = vld [vmem:[%s25] sm:$0xff]
    %v27 = vld [vmem:[#allocation2] sm:$0xff]
    %v28 = vld [vmem:[#allocation2 + $0x8] sm:$0xff]
    %30 = vset.pattern.permute.xlu0 0
    %31 = vperm.xlu0 %30, %v26
    %v32 = vpop.permute.xlu0 %31
    %v34 = vsub.f32 %v27, %v32
    %v35 = vsub.f32 %v28, %v32
    %36 = vst [vmem:[#allocation5] sm:$0xff] %v34
    %37 = vst [vmem:[#allocation5 + $0x8] sm:$0xff] %v35
    // Predicated region
    $region14: #{tpu_custom_call.1} parent=1 // pred_check
      _
    $region15: #{tpu_custom_call.1} parent=1 // pred_check_branch
      %39 = sbr.rel (0) target = $region17
    $region16: #{tpu_custom_call.1} parent=1 // pred_region
      %s41 = ssub.s32 256, 256
      %42 = vsyncadd [#allocation4], %s41
      %s44 = sshll.u32 [#allocation5], 4
      %s45 = int_to_ptr.vmem [resolvable:$true] %s44
      %47 = dma.vmem_to_hbm [thread:$0]  %s45, 256, %s2, [#allocation4]
    $region17: #{tpu_custom_call.1} parent=1 // pred_fallthru
      _
    // Predicated region
    $region18: #{tpu_custom_call.1} parent=1 // pred_check
      _
    $region19: #{tpu_custom_call.1} parent=1 // pred_check_branch
      %49 = sbr.rel (0) target = $region21
    $region20: #{tpu_custom_call.1} parent=1 // pred_region
      %50 = dma.done [#allocation4], 256
    $region21: #{tpu_custom_call.1} parent=1 // pred_fallthru
      _
    %51 = vsyncpa [#allocation3], 1
    %52 = vsyncpa [#allocation4], 1

</llo_original>
